<compile_context>
chip_gen: v6e
topology: v6e:2x2x1
jax: 0.10.0
libtpu: 0.0.40
codegen_flags: <defaults>
</compile_context>

<pallas_src>
import re
from functools import partial

import jax
import jax.numpy as jnp
from jax import lax
from jax.experimental import pallas as pl
from jax.experimental.pallas import tpu as pltpu


# ---------------------------------------------------------------------------
# Kernel A: 1x1-conv K/V projection, computed once per (batch, key tile).
# ---------------------------------------------------------------------------
def _kv_proj_kernel(x_ref, wk_ref, wv_ref, k_ref, v_ref):
    """x_ref: (1, C, TN) bf16; wk/wv: (hidden, C) bf16; k/v out: (1, hidden, TN) bf16."""
    x = x_ref[0]                                                     # (C, TN)
    k_ref[0] = jnp.dot(wk_ref[...], x,
                       preferred_element_type=jnp.float32).astype(k_ref.dtype)
    v_ref[0] = jnp.dot(wv_ref[...], x,
                       preferred_element_type=jnp.float32).astype(v_ref.dtype)


# ---------------------------------------------------------------------------
# Kernel B: attention over one (batch element, query tile).
# ---------------------------------------------------------------------------
def _attention_kernel(xq_ref, k_ref, v_ref, wq_ref, wo_ref, bo_ref, o_ref,
                      q_scr, o_scr, *, heads, dim_head, exp_dtype):
    """One (batch element, query tile) grid step.

      xq_ref: (1, C, TQ)      bf16  query tile (columns of x)
      k_ref:  (1, hidden, N)  bf16  precomputed keys   (resident across qt)
      v_ref:  (1, hidden, N)  bf16  precomputed values (resident across qt)
      wq_ref: (hidden, C)     bf16  q projection, softmax scale pre-folded
      wo_ref: (C, hidden)     bf16  output projection
      bo_ref: (C, 1)          f32   output bias
      o_ref:  (1, C, TQ)      bf16  lane-dense output tile
      q_scr:  (hidden, TQ)    bf16  scratch: projected Q for this tile
      o_scr:  (hidden, TQ)    bf16  scratch: normalized per-head outputs
    """
    # Q projection for this query tile (scale already folded into wq); cast to
    # bf16 once so the per-head slices need no further casts/transposes.
    q_scr[...] = jnp.dot(wq_ref[...], xq_ref[0],
                         preferred_element_type=jnp.float32).astype(jnp.bfloat16)

    k_all = k_ref.at[0]          # (hidden, N) ref views, zero-cost squeeze
    v_all = v_ref.at[0]

    def head_body(h, carry):
        lo = pl.multiple_of(h * dim_head, dim_head)
        q_h = q_scr[pl.ds(lo, dim_head), :]            # (d, TQ) bf16
        k_h = k_all[pl.ds(lo, dim_head), :]            # (d, N)  bf16
        v_h = v_all[pl.ds(lo, dim_head), :]            # (d, N)  bf16

        # sim[j, i] = sum_d k[d, j] * q[d, i]  ->  (N, TQ): keys on sublanes,
        # queries on lanes.  No q transpose; the MXU absorbs the layout.
        sim = lax.dot_general(k_h, q_h, (((0,), (0,)), ((), ())),
                              preferred_element_type=jnp.float32)    # (N, TQ) f32

        # Numerically-stable, *unnormalized* softmax.  max/sum are (1, TQ)
        # lane vectors, exactly the layout needed to scale the PV result.
        m = jnp.max(sim, axis=0, keepdims=True)                      # (1, TQ) f32
        p = jnp.exp((sim - m).astype(exp_dtype))                     # (N, TQ)
        l = jnp.sum(p, axis=0, keepdims=True, dtype=jnp.float32)     # (1, TQ) f32

        # o_h[d, i] = sum_j v[d, j] * p[j, i]   (unnormalized PV matmul),
        # then normalize the small (d, TQ) result, not the (N, TQ) matrix.
        o_h = jnp.dot(v_h, p.astype(jnp.bfloat16),
                      preferred_element_type=jnp.float32)            # (d, TQ) f32
        inv = pl.reciprocal(l, approx=True)                          # (1, TQ)
        o_scr[pl.ds(lo, dim_head), :] = (o_h * inv).astype(o_scr.dtype)
        return carry

    lax.fori_loop(0, heads, head_body, 0, unroll=False)

    # Output 1x1 conv + bias; f32 accumulate, lane-dense bf16 store.
    out = jnp.dot(wo_ref[...], o_scr[...], preferred_element_type=jnp.float32)
    o_ref[0] = (out + bo_ref[...]).astype(o_ref.dtype)


# ---------------------------------------------------------------------------
# Wrapper
# ---------------------------------------------------------------------------
def _tpu_generation():
    """Best-effort TPU generation (5, 6, 7, ...); defaults to 6 if unknown."""
    try:
        kind = jax.devices()[0].device_kind.lower()
    except Exception:
        return 6
    m = re.search(r"(\d+)", kind)
    return int(m.group(1)) if m else 6


def _pick_tile(n, max_tile):
    if n <= max_tile:
        return n
    for t in (max_tile, 512, 256, 128):
        if t <= max_tile and n % t == 0:
            return t
    # Fallback: one big tile.  Correct, but for very large N that is not a
    # multiple of 128 the caller should pad/mask upstream instead.
    return n


def attention_pallas(x_nchw, w_qkv_conv, w_out_conv, b_out, *, heads, dim_head,
                     max_q_tile=None):
    """x_nchw: (B, C, H, W); PyTorch 1x1-conv weights squeezed:
       w_qkv_conv: (3*hidden, C), w_out_conv: (C, hidden), b_out: (C,)."""
    B, C, H, W = x_nchw.shape
    N = H * W
    hidden = heads * dim_head
    scale = dim_head ** (-0.5)

    gen = _tpu_generation()
    # bf16 exp only where the EUP supports it (v6e/v7x); f32 on v5e and older.
    exp_dtype = jnp.bfloat16 if gen >= 6 else jnp.float32
    if max_q_tile is None:
        max_q_tile = 256 if gen >= 7 else 512          # v7x: 64 MiB VMEM
    vmem_limit = (48 if gen >= 7 else 96) * 1024 * 1024

    # NCHW -> (B, C, N): pure reshape, no HBM transpose; bf16 MXU operands.
    x = x_nchw.reshape(B, C, N).astype(jnp.bfloat16)

    # Split fused qkv weight; fold softmax scale into the q rows; cast once.
    w_q = (w_qkv_conv[:hidden] * scale).astype(jnp.bfloat16)        # (hidden, C)
    w_k = w_qkv_conv[hidden:2 * hidden].astype(jnp.bfloat16)        # (hidden, C)
    w_v = w_qkv_conv[2 * hidden:].astype(jnp.bfloat16)              # (hidden, C)
    w_o = w_out_conv.astype(jnp.bfloat16)                           # (C, hidden)
    b_o = b_out.reshape(C, 1).astype(jnp.float32)                   # (C, 1)

    cparams = pltpu.CompilerParams(
        dimension_semantics=("parallel", "parallel"),
        vmem_limit_bytes=vmem_limit,
    )

    # ---- K/V projection: once per (batch, key tile), NOT per query tile ----
    TN = _pick_tile(N, max_q_tile)
    k, v = pl.pallas_call(
        _kv_proj_kernel,
        out_shape=(jax.ShapeDtypeStruct((B, hidden, N), jnp.bfloat16),
                   jax.ShapeDtypeStruct((B, hidden, N), jnp.bfloat16)),
        grid=(B, N // TN),
        in_specs=[
            pl.BlockSpec((1, C, TN), lambda b, t: (b, 0, t)),
            pl.BlockSpec((hidden, C), lambda b, t: (0, 0)),
            pl.BlockSpec((hidden, C), lambda b, t: (0, 0)),
        ],
        out_specs=(pl.BlockSpec((1, hidden, TN), lambda b, t: (b, 0, t)),
                   pl.BlockSpec((1, hidden, TN), lambda b, t: (b, 0, t))),
        compiler_params=cparams,
    )(x, w_k, w_v)

    # ---- Attention over (batch, query tile) --------------------------------
    TQ = _pick_tile(N, max_q_tile)
    n_q = N // TQ

    kernel = partial(_attention_kernel, heads=heads, dim_head=dim_head,
                     exp_dtype=exp_dtype)

    out = pl.pallas_call(
        kernel,
        out_shape=jax.ShapeDtypeStruct((B, C, N), jnp.bfloat16),
        grid=(B, n_q),
        in_specs=[
            # Query tile of x (no duplicate full-context input).
            pl.BlockSpec((1, C, TQ), lambda b, qt: (b, 0, qt)),
            # Precomputed K/V: constant over qt -> fetched once per b, resident.
            pl.BlockSpec((1, hidden, N), lambda b, qt: (b, 0, 0)),
            pl.BlockSpec((1, hidden, N), lambda b, qt: (b, 0, 0)),
            # Weights/bias: constant index maps -> fetched once, kept in VMEM.
            pl.BlockSpec((hidden, C), lambda b, qt: (0, 0)),
            pl.BlockSpec((C, hidden), lambda b, qt: (0, 0)),
            pl.BlockSpec((C, 1), lambda b, qt: (0, 0)),
        ],
        out_specs=pl.BlockSpec((1, C, TQ), lambda b, qt: (b, 0, qt)),
        scratch_shapes=[
            pltpu.VMEM((hidden, TQ), jnp.bfloat16),   # projected Q for the tile
            pltpu.VMEM((hidden, TQ), jnp.bfloat16),   # per-head outputs '(h d)'
        ],
        compiler_params=cparams,
    )(x, k, v, w_q, w_o, b_o)

    # (B, C, N) -> NCHW: pure reshape.
    return out.reshape(B, C, H, W)


# ---------------------------------------------------------------------------
# Pure-JAX f32 mirror of the PyTorch forward, for verification.
# ---------------------------------------------------------------------------
def attention_reference(x_nchw, w_qkv_conv, w_out_conv, b_out, *, heads, dim_head):
    B, C, H, W = x_nchw.shape
    N = H * W
    hidden = heads * dim_head
    scale = dim_head ** (-0.5)

    x = x_nchw.reshape(B, C, N)                                        # (B, C, N)
    qkv = jnp.einsum('fc,bcn->bfn', w_qkv_conv, x, precision='highest')
    q, k, v = jnp.split(qkv, 3, axis=1)

    def split_heads(t):  # (B, hidden, N) -> (B, heads, d, N), head-major
        return t.reshape(B, heads, dim_head, N)

    q, k, v = map(split_heads, (q, k, v))
    q = q * scale
    sim = jnp.einsum('bhdi,bhdj->bhij', q, k, precision='highest')
    attn = jax.nn.softmax(sim, axis=-1)
    out = jnp.einsum('bhij,bhdj->bhdi', attn, v, precision='highest')  # (B, h, d, N)
    out = out.reshape(B, hidden, N)                                    # '(h d)' channels
    out = jnp.einsum('cf,bfn->bcn', w_out_conv, out,
                     precision='highest') + b_out[None, :, None]
    return out.reshape(B, C, H, W)


if __name__ == "__main__":
    B, dim, H, W = 2, 4, 16, 16
    heads, dim_head = 4, 32
    hidden = heads * dim_head

    key = jax.random.PRNGKey(0)
    k1, k2, k3, k4 = jax.random.split(key, 4)
    x = jax.random.normal(k1, (B, dim, H, W), dtype=jnp.float32)
    # PyTorch conv layouts with the 1x1 kernel squeezed.
    w_qkv_conv = jax.random.normal(k2, (3 * hidden, dim), dtype=jnp.float32) * 0.1
    w_out_conv = jax.random.normal(k3, (dim, hidden), dtype=jnp.float32) * 0.1
    b_out = jax.random.normal(k4, (dim,), dtype=jnp.float32) * 0.1

    out = attention_pallas(x, w_qkv_conv, w_out_conv, b_out,
                           heads=heads, dim_head=dim_head)
    out = jax.block_until_ready(out)

    ref = attention_reference(x, w_qkv_conv, w_out_conv, b_out,
                              heads=heads, dim_head=dim_head)
    assert out.shape == (B, dim, H, W)
    # bf16 MXU operands / bf16 writeback vs f32 reference -> relaxed tolerance.
    out_f32 = out.astype(jnp.float32)
    assert jnp.allclose(out_f32, ref, atol=1e-2, rtol=1e-2), "mismatch vs reference"

    print("KERNEL_OK")
</pallas_src>

<mosaic_0001>
module attributes {stable_mosaic.version = 11 : i64} {
  func.func @_kv_proj_kernel(%arg0: i32, %arg1: i32, %arg2: memref<1x4x256xbf16, #tpu.memory_space<vmem>>, %arg3: memref<128x4xbf16, #tpu.memory_space<vmem>>, %arg4: memref<128x4xbf16, #tpu.memory_space<vmem>>, %arg5: memref<1x128x256xbf16, #tpu.memory_space<vmem>>, %arg6: memref<1x128x256xbf16, #tpu.memory_space<vmem>>) attributes {dimension_semantics = [#tpu.dimension_semantics<parallel>, #tpu.dimension_semantics<parallel>], iteration_bounds = array<i64: 2, 1>, scalar_prefetch = 0 : i64, scratch_operands = 0 : i64, tpu.core_type = #tpu.core_type<tc>, window_params = [{transform_indices = @transform_0, window_bounds = array<i64: 1, 4, 256>}, {pipeline_mode = #tpu.pipeline_mode<synchronous>, transform_indices = @transform_1, window_bounds = array<i64: 128, 4>}, {pipeline_mode = #tpu.pipeline_mode<synchronous>, transform_indices = @transform_2, window_bounds = array<i64: 128, 4>}, {transform_indices = @transform_3, window_bounds = array<i64: 1, 128, 256>}, {transform_indices = @transform_4, window_bounds = array<i64: 1, 128, 256>}]} {
    %c0 = arith.constant 0 : index
    %c0_0 = arith.constant 0 : index
    %c0_1 = arith.constant 0 : index
    %0 = vector.load %arg2[%c0, %c0_0, %c0_1] : memref<1x4x256xbf16, #tpu.memory_space<vmem>>, vector<1x4x256xbf16>
    %1 = vector.shape_cast %0 : vector<1x4x256xbf16> to vector<4x256xbf16>
    %c0_2 = arith.constant 0 : index
    %c0_3 = arith.constant 0 : index
    %2 = vector.load %arg3[%c0_2, %c0_3] : memref<128x4xbf16, #tpu.memory_space<vmem>>, vector<128x4xbf16>
    %cst = arith.constant dense<0.000000e+00> : vector<128x256xf32>
    %3 = tpu.matmul %2, %1, %cst {dimension_numbers = #tpu.dot_dimension_numbers<[1], [0], [0], [1], [0, 0, 1, 1], [], []>} : vector<128x4xbf16>, vector<4x256xbf16>, vector<128x256xf32> -> vector<128x256xf32>
    %4 = arith.truncf %3 : vector<128x256xf32> to vector<128x256xbf16>
    %c0_4 = arith.constant 0 : index
    %c0_5 = arith.constant 0 : index
    %c0_6 = arith.constant 0 : index
    %5 = vector.load %arg5[%c0_4, %c0_5, %c0_6] : memref<1x128x256xbf16, #tpu.memory_space<vmem>>, vector<1x128x256xbf16>
    %6 = vector.shape_cast %5 : vector<1x128x256xbf16> to vector<128x256xbf16>
    %7 = vector.shape_cast %4 : vector<128x256xbf16> to vector<1x128x256xbf16>
    tpu.vector_store %arg5[%c0_4, %c0_5, %c0_6], %7 {strides = array<i32>} : memref<1x128x256xbf16, #tpu.memory_space<vmem>>, vector<1x128x256xbf16>,
    %c0_7 = arith.constant 0 : index
    %c0_8 = arith.constant 0 : index
    %8 = vector.load %arg4[%c0_7, %c0_8] : memref<128x4xbf16, #tpu.memory_space<vmem>>, vector<128x4xbf16>
    %cst_9 = arith.constant dense<0.000000e+00> : vector<128x256xf32>
    %9 = tpu.matmul %8, %1, %cst_9 {dimension_numbers = #tpu.dot_dimension_numbers<[1], [0], [0], [1], [0, 0, 1, 1], [], []>} : vector<128x4xbf16>, vector<4x256xbf16>, vector<128x256xf32> -> vector<128x256xf32>
    %10 = arith.truncf %9 : vector<128x256xf32> to vector<128x256xbf16>
    %c0_10 = arith.constant 0 : index
    %c0_11 = arith.constant 0 : index
    %c0_12 = arith.constant 0 : index
    %11 = vector.load %arg6[%c0_10, %c0_11, %c0_12] : memref<1x128x256xbf16, #tpu.memory_space<vmem>>, vector<1x128x256xbf16>
    %12 = vector.shape_cast %11 : vector<1x128x256xbf16> to vector<128x256xbf16>
    %13 = vector.shape_cast %10 : vector<128x256xbf16> to vector<1x128x256xbf16>
    tpu.vector_store %arg6[%c0_10, %c0_11, %c0_12], %13 {strides = array<i32>} : memref<1x128x256xbf16, #tpu.memory_space<vmem>>, vector<1x128x256xbf16>,
    return
  }
  func.func @transform_0(%arg0: i32, %arg1: i32) -> (i32, i32, i32) {
    %c0_i32 = arith.constant 0 : i32
    %c0_i32_0 = arith.constant 0 : i32
    return %arg0, %c0_i32, %arg1 : i32, i32, i32
  }
  func.func @transform_1(%arg0: i32, %arg1: i32) -> (i32, i32) {
    %c0_i32 = arith.constant 0 : i32
    %c0_i32_0 = arith.constant 0 : i32
    %c0_i32_1 = arith.constant 0 : i32
    return %c0_i32, %c0_i32_0 : i32, i32
  }
  func.func @transform_2(%arg0: i32, %arg1: i32) -> (i32, i32) {
    %c0_i32 = arith.constant 0 : i32
    %c0_i32_0 = arith.constant 0 : i32
    %c0_i32_1 = arith.constant 0 : i32
    return %c0_i32, %c0_i32_0 : i32, i32
  }
  func.func @transform_3(%arg0: i32, %arg1: i32) -> (i32, i32, i32) {
    %c0_i32 = arith.constant 0 : i32
    %c0_i32_0 = arith.constant 0 : i32
    return %arg0, %c0_i32, %arg1 : i32, i32, i32
  }
  func.func @transform_4(%arg0: i32, %arg1: i32) -> (i32, i32, i32) {
    %c0_i32 = arith.constant 0 : i32
    %c0_i32_0 = arith.constant 0 : i32
    return %arg0, %c0_i32, %arg1 : i32, i32, i32
  }
}

</mosaic_0001>

<llo_original>
// kernel: tpu_custom_call.1
$region0: #{tpu_custom_call.1}
  #allocation0 [shape = 'u32[]', space=smem, size = 0x4, offset = 0x4, fixed_abs, tag = 'smem constant byte address 0x4 - core index']
  #allocation1 [shape = 'u32[144,128]{1,0:T(1,128)}', space=vmem, size = 0x12000, scoped, tag = 'internal scratch']
  %s0 = inlined_call_operand.vmem [shape: bf16[2,4,256], index: 0, kind: input, shape index: {}]
  %s1 = inlined_call_operand.vmem [shape: bf16[128,4], index: 1, kind: input, shape index: {}]
  %s2 = inlined_call_operand.vmem [shape: bf16[128,4], index: 2, kind: input, shape index: {}]
  %s3 = inlined_call_operand.hbm [shape: bf16[2,128,256], index: 3, kind: output, shape index: {0}]
  %s4 = inlined_call_operand.hbm [shape: bf16[2,128,256], index: 4, kind: output, shape index: {1}]
  %5 = xla_tuple %s3, %s4
  %s6 = sld [smem:[#allocation0]]
  $region53: #{tpu_custom_call.1} parent=0
    _
  %s8 = ssub.s32 1, %s6
  %s9 = scalar_select 0, %s8, %s6
  $region1: #{tpu_custom_call.1} parent=0
    #allocation2 [shape = 'u8[131072]{0}', space=vmem, size = 0x20000, scoped, tag = 'output window, operand 0']
    #allocation3 [shape = 's32[2]{0}', space=sflag, size = 0x8, scoped, tag = 'scoped memory for tpu_custom_call.1']
    #allocation4 [shape = 'u8[131072]{0}', space=vmem, size = 0x20000, scoped, tag = 'output window, operand 1']
    #allocation5 [shape = 's32[2]{0}', space=sflag, size = 0x8, scoped, tag = 'scoped memory for tpu_custom_call.1']
    %10 = vsyncpa [#allocation3], 0
    %s11 = scalar_lea.sflag [#allocation3], 1
    %12 = vsyncpa %s11, 0
    %13 = vsyncpa [#allocation5], 0
    %s14 = scalar_lea.sflag [#allocation5], 1
    %15 = vsyncpa %s14, 0
    loop: start=0, step=1, limit=4
    $region2: #{tpu_custom_call.1} parent=1 // loop_pre_header
      _
    $region3: #{tpu_custom_call.1} parent=1 // loop_header
      %s17 = sphi 0, %s21
      %p18 = scmp.ge.s32.totalorder %s17, 4
      %s24 = sphi 0, %s36
      %s25 = sphi 0, %s32
      %s26 = sphi 0, %s24
      %s27 = sphi 0, %s25
      %s28 = sphi 0, %s26
      %s29 = sphi 0, %s27
      %s41 = sphi 0, %s43
      %s44 = sphi 0, %s41
      %s45 = sphi 0, %s44
      %s61 = sphi 0, %s45
      %s65 = sphi 0, %s65
      %s67 = sphi 0, %s65
      %s68 = sphi 0, %s67
      %s82 = sphi 0, %s68
      %s86 = sphi 0, %s86
      %s88 = sphi 0, %s86
      %s89 = sphi 0, %s88
      %s103 = sphi 0, %s89
      %s111 = sphi 0, %s113
      %s114 = sphi 0, %s111
      %s115 = sphi 0, %s114
      %s131 = sphi 0, %s115
      %s139 = sphi 0, %s141
      %s142 = sphi 0, %s139
      %s143 = sphi 0, %s142
      %s159 = sphi 0, %s143
    $region4: #{tpu_custom_call.1} parent=1 // loop_header_branch
      %20 = sbr.rel (%p18) target = $region8
    $region5: #{tpu_custom_call.1} parent=1 // loop_body
      %s22 = ssub.s32 %s17, 1
      %s23 = ssub.s32 %s17, 2
      %s30 = sadd.s32 1, %s25
      %p31 = scmp.ge.s32.totalorder %s30, 1
      %s32 = scalar_select %p31, 0, %s30
      %s33 = sadd.s32 1, %s24
      %s34 = scalar_select %p31, %s33, %s24
      %p35 = scmp.ge.s32.totalorder %s34, 2
      %s36 = scalar_select %p35, 0, %s34
      %s37 = ssub.s32 %s24, %s36
      %s38 = ssub.s32 %s25, %s32
      %s39 = sor.u32 %s37, %s38
      %p40 = scmp.eq.s32.totalorder %s39, 0
      %s42 = sadd.s32 %s41, 1
      %s43 = scalar_select %p40, %s41, %s42
      %p46 = pneg %p40
      %p47 = scmp.eq.s32.totalorder %s17, 1
      %p48 = por %p46, %p47
      %p49 = scmp.ne.s32.totalorder %s41, %s44
      %p50 = scmp.eq.s32.totalorder %s17, 0
      %p51 = por %p49, %p50
      %p52 = scmp.ne.s32.totalorder %s41, %s44
      %p53 = scmp.eq.s32.totalorder %s22, 1
      %p54 = por %p52, %p53
      %p55 = scmp.ne.s32.totalorder %s44, %s45
      %p56 = scmp.eq.s32.totalorder %s22, 0
      %p57 = por %p55, %p56
      %p58 = scmp.ne.s32.totalorder %s44, %s45
      %p59 = scmp.eq.s32.totalorder %s23, 1
      %p60 = por %p58, %p59
      %p62 = scmp.ne.s32.totalorder %s45, %s61
      %p63 = scmp.eq.s32.totalorder %s23, 0
      %p64 = por %p62, %p63
      %s66 = sadd.s32 %s65, 1
      %p69 = scmp.eq.s32.totalorder %s17, 1
      %p70 = scmp.ne.s32.totalorder %s65, %s67
      %p71 = scmp.eq.s32.totalorder %s17, 0
      %p72 = por %p70, %p71
      %p73 = scmp.ne.s32.totalorder %s65, %s67
      %p74 = scmp.eq.s32.totalorder %s22, 1
      %p75 = por %p73, %p74
      %p76 = scmp.ne.s32.totalorder %s67, %s68
      %p77 = scmp.eq.s32.totalorder %s22, 0
      %p78 = por %p76, %p77
      %p79 = scmp.ne.s32.totalorder %s67, %s68
      %p80 = scmp.eq.s32.totalorder %s23, 1
      %p81 = por %p79, %p80
      %p83 = scmp.ne.s32.totalorder %s68, %s82
      %p84 = scmp.eq.s32.totalorder %s23, 0
      %p85 = por %p83, %p84
      %s87 = sadd.s32 %s86, 1
      %p90 = scmp.eq.s32.totalorder %s17, 1
      %p91 = scmp.ne.s32.totalorder %s86, %s88
      %p92 = scmp.eq.s32.totalorder %s17, 0
      %p93 = por %p91, %p92
      %p94 = scmp.ne.s32.totalorder %s86, %s88
      %p95 = scmp.eq.s32.totalorder %s22, 1
      %p96 = por %p94, %p95
      %p97 = scmp.ne.s32.totalorder %s88, %s89
      %p98 = scmp.eq.s32.totalorder %s22, 0
      %p99 = por %p97, %p98
      %p100 = scmp.ne.s32.totalorder %s88, %s89
      %p101 = scmp.eq.s32.totalorder %s23, 1
      %p102 = por %p100, %p101
      %p104 = scmp.ne.s32.totalorder %s89, %s103
      %p105 = scmp.eq.s32.totalorder %s23, 0
      %p106 = por %p104, %p105
      %s107 = ssub.s32 %s24, %s36
      %s108 = ssub.s32 %s25, %s32
      %s109 = sor.u32 %s107, %s108
      %p110 = scmp.eq.s32.totalorder %s109, 0
      %s112 = sadd.s32 %s111, 1
      %s113 = scalar_select %p110, %s111, %s112
      %p116 = pneg %p110
      %p117 = scmp.eq.s32.totalorder %s17, 1
      %p118 = por %p116, %p117
      %p119 = scmp.ne.s32.totalorder %s111, %s114
      %p120 = scmp.eq.s32.totalorder %s17, 0
      %p121 = por %p119, %p120
      %p122 = scmp.ne.s32.totalorder %s111, %s114
      %p123 = scmp.eq.s32.totalorder %s22, 1
      %p124 = por %p122, %p123
      %p125 = scmp.ne.s32.totalorder %s114, %s115
      %p126 = scmp.eq.s32.totalorder %s22, 0
      %p127 = por %p125, %p126
      %p128 = scmp.ne.s32.totalorder %s114, %s115
      %p129 = scmp.eq.s32.totalorder %s23, 1
      %p130 = por %p128, %p129
      %p132 = scmp.ne.s32.totalorder %s115, %s131
      %p133 = scmp.eq.s32.totalorder %s23, 0
      %p134 = por %p132, %p133
      %s135 = ssub.s32 %s24, %s36
      %s136 = ssub.s32 %s25, %s32
      %s137 = sor.u32 %s135, %s136
      %p138 = scmp.eq.s32.totalorder %s137, 0
      %s140 = sadd.s32 %s139, 1
      %s141 = scalar_select %p138, %s139, %s140
      %p144 = pneg %p138
      %p145 = scmp.eq.s32.totalorder %s17, 1
      %p146 = por %p144, %p145
      %p147 = scmp.ne.s32.totalorder %s139, %s142
      %p148 = scmp.eq.s32.totalorder %s17, 0
      %p149 = por %p147, %p148
      %p150 = scmp.ne.s32.totalorder %s139, %s142
      %p151 = scmp.eq.s32.totalorder %s22, 1
      %p152 = por %p150, %p151
      %p153 = scmp.ne.s32.totalorder %s142, %s143
      %p154 = scmp.eq.s32.totalorder %s22, 0
      %p155 = por %p153, %p154
      %p156 = scmp.ne.s32.totalorder %s142, %s143
      %p157 = scmp.eq.s32.totalorder %s23, 1
      %p158 = por %p156, %p157
      %p160 = scmp.ne.s32.totalorder %s143, %s159
      %p161 = scmp.eq.s32.totalorder %s23, 0
      %p162 = por %p160, %p161
      %p163 = scmp.le.s32.totalorder 1, %s17
      %p164 = scmp.lt.s32.totalorder %s17, 3
      %p165 = pnand %p163, %p164
      %p166 = pneg %p165
      // Predicated region
      $region9: #{tpu_custom_call.1} parent=5 // pred_check
        _
      $region10: #{tpu_custom_call.1} parent=5 // pred_check_branch
        %168 = sbr.rel (%p165) target = $region12
      $region11: #{tpu_custom_call.1} parent=5 // pred_region
        %s169 = ssub.s32 %s17, 1
        // Predicated region
        $region13: #{tpu_custom_call.1} parent=11 // pred_check
          %p170 = pneg %p78
        $region14: #{tpu_custom_call.1} parent=11 // pred_check_branch
          %172 = sbr.rel (%p170) target = $region16
        $region15: #{tpu_custom_call.1} parent=11 // pred_region
          _
        $region16: #{tpu_custom_call.1} parent=11 // pred_fallthru
          _
        // Predicated region
        $region17: #{tpu_custom_call.1} parent=11 // pred_check
          %p173 = pneg %p99
        $region18: #{tpu_custom_call.1} parent=11 // pred_check_branch
          %175 = sbr.rel (%p173) target = $region20
        $region19: #{tpu_custom_call.1} parent=11 // pred_region
          _
        $region20: #{tpu_custom_call.1} parent=11 // pred_fallthru
          _
      $region12: #{tpu_custom_call.1} parent=5 // pred_fallthru
        _
      %p176 = scmp.lt.s32.totalorder %s17, 2
      // Predicated region
      $region21: #{tpu_custom_call.1} parent=5 // pred_check
        %p177 = pneg %p176
      $region22: #{tpu_custom_call.1} parent=5 // pred_check_branch
        %179 = sbr.rel (%p177) target = $region24
      $region23: #{tpu_custom_call.1} parent=5 // pred_region
        // Predicated region
        $region25: #{tpu_custom_call.1} parent=23 // pred_check
          %p180 = pneg %p51
        $region26: #{tpu_custom_call.1} parent=23 // pred_check_branch
          %182 = sbr.rel (%p180) target = $region28
        $region27: #{tpu_custom_call.1} parent=23 // pred_region
          %s183 = smul.u32 2, %s25
          %p184 = scmp.lt.s32.totalorder %s24, 1
          %s185 = scalar_select %p184, %s24, 1
          %p186 = scmp.lt.s32.totalorder %s183, 1
          %s187 = scalar_select %p186, %s183, 1
          %s188 = smul.addr %s185, 2
          %s189 = sadd.s32 %s187, %s188
          %s190 = smul.addr %s189, 2
          %s191 = scalar_lea.vmem %s0, %s190
          %s192 = smul.u32 2, %s25
        $region28: #{tpu_custom_call.1} parent=23 // pred_fallthru
          _
      $region24: #{tpu_custom_call.1} parent=5 // pred_fallthru
        _
      %p193 = scmp.le.s32.totalorder 1, %s17
      %p194 = scmp.lt.s32.totalorder %s17, 3
      %p195 = pnand %p193, %p194
      %p196 = pneg %p195
      // Predicated region
      $region29: #{tpu_custom_call.1} parent=5 // pred_check
        _
      $region30: #{tpu_custom_call.1} parent=5 // pred_check_branch
        %198 = sbr.rel (%p195) target = $region32
      $region31: #{tpu_custom_call.1} parent=5 // pred_region
        %s199 = ssub.s32 %s17, 1
        %s200 = smul.u32 2, %s27
        %p201 = scmp.lt.s32.totalorder %s26, 1
        %s202 = scalar_select %p201, %s26, 1
        %p203 = scmp.lt.s32.totalorder %s200, 1
        %s204 = scalar_select %p203, %s200, 1
        %s205 = smul.addr %s202, 2
        %s206 = sadd.s32 %s204, %s205
        %s207 = smul.addr %s206, 2
        %s208 = scalar_lea.vmem %s0, %s207
        %p209 = pneg %p57
        %p210 = pneg %p54
        %p211 = pneg %p78
        %p212 = pneg %p75
        %p213 = pneg %p99
        %p214 = pneg %p96
        %p215 = pneg %p127
        %p216 = pneg %p124
        %s217 = sand.u32 %s114, 1
        %s218 = scalar_lea.sflag [#allocation3], %s217
        %s219 = sand.u32 %s114, 1
        %s220 = smul.addr %s219, 128
        %s221 = scalar_lea.vmem [#allocation2], %s220
        %p222 = pneg %p155
        %p223 = pneg %p152
        %s224 = sand.u32 %s142, 1
        %s225 = scalar_lea.sflag [#allocation5], %s224
        %s226 = sand.u32 %s142, 1
        %s227 = smul.addr %s226, 128
        %s228 = scalar_lea.vmem [#allocation4], %s227
        %s229 = smul.u32 2, %s27
        %p230 = scmp.lt.s32.totalorder %s26, 1
        %s231 = scalar_select %p230, %s26, 1
        %p232 = scmp.lt.s32.totalorder %s229, 1
        %s233 = scalar_select %p232, %s229, 1
        %s234 = smul.addr %s231, 2
        %s235 = sadd.s32 %s233, %s234
        %s236 = smul.addr %s235, 2
        %s237 = scalar_lea.vmem %s0, %s236
        %s238 = smul.u32 2, %s27
        %s239 = smul.u32 2, %s27
        %s240 = smul.u32 2, %s27
        %v242 = vld [vmem:[%s237] sm:$0xf]
        %v243 = vld [vmem:[%s1] sm:$0xf]
        %v244 = vld [vmem:[%s1 + $0x4] sm:$0xf]
        %v245 = vld [vmem:[%s1 + $0x8] sm:$0xf]
        %v246 = vld [vmem:[%s1 + $0xc] sm:$0xf]
        %v247 = vld [vmem:[%s1 + $0x10] sm:$0xf]
        %v248 = vld [vmem:[%s1 + $0x14] sm:$0xf]
        %v249 = vld [vmem:[%s1 + $0x18] sm:$0xf]
        %v250 = vld [vmem:[%s1 + $0x1c] sm:$0xf]
        %v251 = vld [vmem:[%s1 + $0x20] sm:$0xf]
        %v252 = vld [vmem:[%s1 + $0x24] sm:$0xf]
        %v253 = vld [vmem:[%s1 + $0x28] sm:$0xf]
        %v254 = vld [vmem:[%s1 + $0x2c] sm:$0xf]
        %v255 = vld [vmem:[%s1 + $0x30] sm:$0xf]
        %v256 = vld [vmem:[%s1 + $0x34] sm:$0xf]
        %v257 = vld [vmem:[%s1 + $0x38] sm:$0xf]
        %v258 = vld [vmem:[%s1 + $0x3c] sm:$0xf]
        %v275 = vunpack.c.l.b16 %v243
        %v276 = vunpack.c.l.b16 %v244
        %v277 = vunpack.c.l.b16 %v245
        %v278 = vunpack.c.l.b16 %v246
        %v279 = vunpack.c.l.b16 %v247
        %v280 = vunpack.c.l.b16 %v248
        %v281 = vunpack.c.l.b16 %v249
        %v282 = vunpack.c.l.b16 %v250
        %v283 = vunpack.c.l.b16 %v251
        %v284 = vunpack.c.l.b16 %v252
        %v285 = vunpack.c.l.b16 %v253
        %v286 = vunpack.c.l.b16 %v254
        %v287 = vunpack.c.l.b16 %v255
        %v288 = vunpack.c.l.b16 %v256
        %v289 = vunpack.c.l.b16 %v257
        %v290 = vunpack.c.l.b16 %v258
        %v291 = vpack.c.b16 %v276, %v275
        %v292 = vpack.c.b16 %v278, %v277
        %v293 = vpack.c.b16 %v280, %v279
        %v294 = vpack.c.b16 %v282, %v281
        %v295 = vpack.c.b16 %v284, %v283
        %v296 = vpack.c.b16 %v286, %v285
        %v297 = vpack.c.b16 %v288, %v287
        %v298 = vpack.c.b16 %v290, %v289
        %v301 = vunpack.c.l.s4 1983009808
        %v302 = vunpack.c.0.s8 %v301
        %v303 = vlaneseq
        %v304 = vshrl.u32 %v303, 7
        %v305 = vsub.s32 %v302, %v304
        %v306 = vrot.slane %v242, %v305
        %v307 = vcombine.high %v306, %v306
        %vm308 = vcmask 31744
        %v310 = vsel %vm308, %v291, 0
        %v313 = vsel %vm308, %v292, 0
        %v316 = vsel %vm308, %v293, 0
        %v319 = vsel %vm308, %v294, 0
        %v322 = vsel %vm308, %v295, 0
        %v325 = vsel %vm308, %v296, 0
        %v328 = vsel %vm308, %v297, 0
        %v331 = vsel %vm308, %v298, 0
        %vm333 = vcmask 1041408
        %v335 = vsel %vm333, %v306, 0
        %v338 = vsel %vm333, %v307, 0
        %340 = vmatprep.subr.bf16.mxu0 0
        %341 = vmatpush1.bf16.msra.mxu0 0
        %342 = vmatprep.subr.bf16.mxu0 0
        %343 = vmatpush1.bf16.msra.mxu0 0
        %344 = vmatprep.subr.bf16.mxu0 0
        %345 = vmatpush1.bf16.msra.mxu0 0
        %346 = vmatprep.subr.bf16.mxu0 0
        %347 = vmatpush1.bf16.msra.mxu0 0
        %348 = vmatprep.subr.bf16.mxu0 0
        %349 = vmatpush1.bf16.msra.mxu0 0
        %350 = vmatprep.subr.bf16.mxu0 0
        %351 = vmatpush1.bf16.msra.mxu0 0
        %352 = vmatprep.subr.bf16.mxu0 0
        %353 = vmatpush1.bf16.msra.mxu0 0
        %354 = vmatprep.subr.bf16.mxu0 %v338
        %355 = vmatpush1.bf16.msra.mxu0 %v335
        %356 = vmatprep.subr.bf16.mxu0 0
        %357 = vmatpush2.bf16.msra.mxu0 0
        %358 = vmatprep.subr.bf16.mxu0 0
        %359 = vmatpush2.bf16.msra.mxu0 0
        %360 = vmatprep.subr.bf16.mxu0 0
        %361 = vmatpush2.bf16.msra.mxu0 0
        %362 = vmatprep.subr.bf16.mxu0 0
        %363 = vmatpush2.bf16.msra.mxu0 0
        %364 = vmatprep.subr.bf16.mxu0 0
        %365 = vmatpush2.bf16.msra.mxu0 0
        %366 = vmatprep.subr.bf16.mxu0 0
        %367 = vmatpush2.bf16.msra.mxu0 0
        %368 = vmatprep.subr.bf16.mxu0 0
        %369 = vmatpush2.bf16.msra.mxu0 0
        %370 = vmatprep.subr.bf16.mxu0 0
        %371 = vmatpush2.bf16.msra.mxu0 0
        %372 = vmatprep.mubr.bf16.mxu0 0
        %373 = vmatmul.mubr.bf16.gmra.mxu0 %v310
        %v374 = vpop.f32.mrf.mxu0
        %v375 = vadd.f32 0.0, %v374
        %v376 = vpop.f32.mrf.mxu0
        %v377 = vadd.f32 0.0, %v376
        %v378 = vpop.f32.mrf.mxu0
        %v379 = vadd.f32 0.0, %v378
        %v380 = vpop.f32.mrf.mxu0
        %v381 = vadd.f32 0.0, %v380
        %382 = vmatprep.mubr.bf16.mxu0 0
        %383 = vmatmul.mubr.bf16.gmra.mxu0 %v313
        %v384 = vpop.f32.mrf.mxu0
        %v385 = vadd.f32 0.0, %v384
        %v386 = vpop.f32.mrf.mxu0
        %v387 = vadd.f32 0.0, %v386
        %v388 = vpop.f32.mrf.mxu0
        %v389 = vadd.f32 0.0, %v388
        %v390 = vpop.f32.mrf.mxu0
        %v391 = vadd.f32 0.0, %v390
        %392 = vmatprep.mubr.bf16.mxu0 0
        %393 = vmatmul.mubr.bf16.gmra.mxu0 %v316
        %v394 = vpop.f32.mrf.mxu0
        %v395 = vadd.f32 0.0, %v394
        %v396 = vpop.f32.mrf.mxu0
        %v397 = vadd.f32 0.0, %v396
        %v398 = vpop.f32.mrf.mxu0
        %v399 = vadd.f32 0.0, %v398
        %v400 = vpop.f32.mrf.mxu0
        %v401 = vadd.f32 0.0, %v400
        %402 = vmatprep.mubr.bf16.mxu0 0
        %403 = vmatmul.mubr.bf16.gmra.mxu0 %v319
        %v404 = vpop.f32.mrf.mxu0
        %v405 = vadd.f32 0.0, %v404
        %v406 = vpop.f32.mrf.mxu0
        %v407 = vadd.f32 0.0, %v406
        %v408 = vpop.f32.mrf.mxu0
        %v409 = vadd.f32 0.0, %v408
        %v410 = vpop.f32.mrf.mxu0
        %v411 = vadd.f32 0.0, %v410
        %412 = vmatprep.mubr.bf16.mxu0 0
        %413 = vmatmul.mubr.bf16.gmra.mxu0 %v322
        %v414 = vpop.f32.mrf.mxu0
        %v415 = vadd.f32 0.0, %v414
        %v416 = vpop.f32.mrf.mxu0
        %v417 = vadd.f32 0.0, %v416
        %v418 = vpop.f32.mrf.mxu0
        %v419 = vadd.f32 0.0, %v418
        %v420 = vpop.f32.mrf.mxu0
        %v421 = vadd.f32 0.0, %v420
        %422 = vmatprep.mubr.bf16.mxu0 0
        %423 = vmatmul.mubr.bf16.gmra.mxu0 %v325
        %v424 = vpop.f32.mrf.mxu0
        %v425 = vadd.f32 0.0, %v424
        %v426 = vpop.f32.mrf.mxu0
        %v427 = vadd.f32 0.0, %v426
        %v428 = vpop.f32.mrf.mxu0
        %v429 = vadd.f32 0.0, %v428
        %v430 = vpop.f32.mrf.mxu0
        %v431 = vadd.f32 0.0, %v430
        %432 = vmatprep.mubr.bf16.mxu0 0
        %433 = vmatmul.mubr.bf16.gmra.mxu0 %v328
        %v434 = vpop.f32.mrf.mxu0
        %v435 = vadd.f32 0.0, %v434
        %v436 = vpop.f32.mrf.mxu0
        %v437 = vadd.f32 0.0, %v436
        %v438 = vpop.f32.mrf.mxu0
        %v439 = vadd.f32 0.0, %v438
        %v440 = vpop.f32.mrf.mxu0
        %v441 = vadd.f32 0.0, %v440
        %442 = vmatprep.mubr.bf16.mxu0 0
        %443 = vmatmul.mubr.bf16.gmra.mxu0 %v331
        %v444 = vpop.f32.mrf.mxu0
        %v445 = vadd.f32 0.0, %v444
        %v446 = vpop.f32.mrf.mxu0
        %v447 = vadd.f32 0.0, %v446
        %v448 = vpop.f32.mrf.mxu0
        %v449 = vadd.f32 0.0, %v448
        %v450 = vpop.f32.mrf.mxu0
        %v451 = vadd.f32 0.0, %v450
        %452 = vdwg.mxu0
        %v453 = vpack.c.bf16 %v379, %v375
        %v454 = vpack.c.bf16 %v381, %v377
        %v455 = vpack.c.bf16 %v389, %v385
        %v456 = vpack.c.bf16 %v391, %v387
        %v457 = vpack.c.bf16 %v399, %v395
        %v458 = vpack.c.bf16 %v401, %v397
        %v459 = vpack.c.bf16 %v409, %v405
        %v460 = vpack.c.bf16 %v411, %v407
        %v461 = vpack.c.bf16 %v419, %v415
        %v462 = vpack.c.bf16 %v421, %v417
        %v463 = vpack.c.bf16 %v429, %v425
        %v464 = vpack.c.bf16 %v431, %v427
        %v465 = vpack.c.bf16 %v439, %v435
        %v466 = vpack.c.bf16 %v441, %v437
        %v467 = vpack.c.bf16 %v449, %v445
        %v468 = vpack.c.bf16 %v451, %v447
        %v485 = vunpack.c.l.b16 %v453
        %v486 = vunpack.c.l.b16 %v454
        %v487 = vunpack.c.h.b16 %v453
        %v488 = vunpack.c.h.b16 %v454
        %v489 = vunpack.c.l.b16 %v455
        %v490 = vunpack.c.l.b16 %v456
        %v491 = vunpack.c.h.b16 %v455
        %v492 = vunpack.c.h.b16 %v456
        %v493 = vunpack.c.l.b16 %v457
        %v494 = vunpack.c.l.b16 %v458
        %v495 = vunpack.c.h.b16 %v457
        %v496 = vunpack.c.h.b16 %v458
        %v497 = vunpack.c.l.b16 %v459
        %v498 = vunpack.c.l.b16 %v460
        %v499 = vunpack.c.h.b16 %v459
        %v500 = vunpack.c.h.b16 %v460
        %v501 = vunpack.c.l.b16 %v461
        %v502 = vunpack.c.l.b16 %v462
        %v503 = vunpack.c.h.b16 %v461
        %v504 = vunpack.c.h.b16 %v462
        %v505 = vunpack.c.l.b16 %v463
        %v506 = vunpack.c.l.b16 %v464
        %v507 = vunpack.c.h.b16 %v463
        %v508 = vunpack.c.h.b16 %v464
        %v509 = vunpack.c.l.b16 %v465
        %v510 = vunpack.c.l.b16 %v466
        %v511 = vunpack.c.h.b16 %v465
        %v512 = vunpack.c.h.b16 %v466
        %v513 = vunpack.c.l.b16 %v467
        %v514 = vunpack.c.l.b16 %v468
        %v515 = vunpack.c.h.b16 %v467
        %v516 = vunpack.c.h.b16 %v468
        %v517 = vpack.c.b16 %v486, %v485
        %v518 = vpack.c.b16 %v488, %v487
        %v519 = vpack.c.b16 %v490, %v489
        %v520 = vpack.c.b16 %v492, %v491
        %v521 = vpack.c.b16 %v494, %v493
        %v522 = vpack.c.b16 %v496, %v495
        %v523 = vpack.c.b16 %v498, %v497
        %v524 = vpack.c.b16 %v500, %v499
        %v525 = vpack.c.b16 %v502, %v501
        %v526 = vpack.c.b16 %v504, %v503
        %v527 = vpack.c.b16 %v506, %v505
        %v528 = vpack.c.b16 %v508, %v507
        %v529 = vpack.c.b16 %v510, %v509
        %v530 = vpack.c.b16 %v512, %v511
        %v531 = vpack.c.b16 %v514, %v513
        %v532 = vpack.c.b16 %v516, %v515
        %549 = vst [vmem:[%s221] sm:$0xff] %v517
        %550 = vst [vmem:[%s221 + $0x8] sm:$0xff] %v518
        %551 = vst [vmem:[%s221 + $0x10] sm:$0xff] %v519
        %552 = vst [vmem:[%s221 + $0x18] sm:$0xff] %v520
        %553 = vst [vmem:[%s221 + $0x20] sm:$0xff] %v521
        %554 = vst [vmem:[%s221 + $0x28] sm:$0xff] %v522
        %555 = vst [vmem:[%s221 + $0x30] sm:$0xff] %v523
        %556 = vst [vmem:[%s221 + $0x38] sm:$0xff] %v524
        %557 = vst [vmem:[%s221 + $0x40] sm:$0xff] %v525
        %558 = vst [vmem:[%s221 + $0x48] sm:$0xff] %v526
        %559 = vst [vmem:[%s221 + $0x50] sm:$0xff] %v527
        %560 = vst [vmem:[%s221 + $0x58] sm:$0xff] %v528
        %561 = vst [vmem:[%s221 + $0x60] sm:$0xff] %v529
        %562 = vst [vmem:[%s221 + $0x68] sm:$0xff] %v530
        %563 = vst [vmem:[%s221 + $0x70] sm:$0xff] %v531
        %564 = vst [vmem:[%s221 + $0x78] sm:$0xff] %v532
        %v565 = vld [vmem:[%s2] sm:$0xf]
        %v566 = vld [vmem:[%s2 + $0x4] sm:$0xf]
        %v567 = vld [vmem:[%s2 + $0x8] sm:$0xf]
        %v568 = vld [vmem:[%s2 + $0xc] sm:$0xf]
        %v569 = vld [vmem:[%s2 + $0x10] sm:$0xf]
        %v570 = vld [vmem:[%s2 + $0x14] sm:$0xf]
        %v571 = vld [vmem:[%s2 + $0x18] sm:$0xf]
        %v572 = vld [vmem:[%s2 + $0x1c] sm:$0xf]
        %v573 = vld [vmem:[%s2 + $0x20] sm:$0xf]
        %v574 = vld [vmem:[%s2 + $0x24] sm:$0xf]
        %v575 = vld [vmem:[%s2 + $0x28] sm:$0xf]
        %v576 = vld [vmem:[%s2 + $0x2c] sm:$0xf]
        %v577 = vld [vmem:[%s2 + $0x30] sm:$0xf]
        %v578 = vld [vmem:[%s2 + $0x34] sm:$0xf]
        %v579 = vld [vmem:[%s2 + $0x38] sm:$0xf]
        %v580 = vld [vmem:[%s2 + $0x3c] sm:$0xf]
        %v597 = vunpack.c.l.b16 %v565
        %v598 = vunpack.c.l.b16 %v566
        %v599 = vunpack.c.l.b16 %v567
        %v600 = vunpack.c.l.b16 %v568
        %v601 = vunpack.c.l.b16 %v569
        %v602 = vunpack.c.l.b16 %v570
        %v603 = vunpack.c.l.b16 %v571
        %v604 = vunpack.c.l.b16 %v572
        %v605 = vunpack.c.l.b16 %v573
        %v606 = vunpack.c.l.b16 %v574
        %v607 = vunpack.c.l.b16 %v575
        %v608 = vunpack.c.l.b16 %v576
        %v609 = vunpack.c.l.b16 %v577
        %v610 = vunpack.c.l.b16 %v578
        %v611 = vunpack.c.l.b16 %v579
        %v612 = vunpack.c.l.b16 %v580
        %v613 = vpack.c.b16 %v598, %v597
        %v614 = vpack.c.b16 %v600, %v599
        %v615 = vpack.c.b16 %v602, %v601
        %v616 = vpack.c.b16 %v604, %v603
        %v617 = vpack.c.b16 %v606, %v605
        %v618 = vpack.c.b16 %v608, %v607
        %v619 = vpack.c.b16 %v610, %v609
        %v620 = vpack.c.b16 %v612, %v611
        %v622 = vsel %vm308, %v613, 0
        %v625 = vsel %vm308, %v614, 0
        %v628 = vsel %vm308, %v615, 0
        %v631 = vsel %vm308, %v616, 0
        %v634 = vsel %vm308, %v617, 0
        %v637 = vsel %vm308, %v618, 0
        %v640 = vsel %vm308, %v619, 0
        %v643 = vsel %vm308, %v620, 0
        %645 = vmatprep.subr.bf16.mxu0 0
        %646 = vmatpush1.bf16.msra.mxu0 0
        %647 = vmatprep.subr.bf16.mxu0 0
        %648 = vmatpush1.bf16.msra.mxu0 0
        %649 = vmatprep.subr.bf16.mxu0 0
        %650 = vmatpush1.bf16.msra.mxu0 0
        %651 = vmatprep.subr.bf16.mxu0 0
        %652 = vmatpush1.bf16.msra.mxu0 0
        %653 = vmatprep.subr.bf16.mxu0 0
        %654 = vmatpush1.bf16.msra.mxu0 0
        %655 = vmatprep.subr.bf16.mxu0 0
        %656 = vmatpush1.bf16.msra.mxu0 0
        %657 = vmatprep.subr.bf16.mxu0 0
        %658 = vmatpush1.bf16.msra.mxu0 0
        %659 = vmatprep.subr.bf16.mxu0 %v338
        %660 = vmatpush1.bf16.msra.mxu0 %v335
        %661 = vmatprep.subr.bf16.mxu0 0
        %662 = vmatpush2.bf16.msra.mxu0 0
        %663 = vmatprep.subr.bf16.mxu0 0
        %664 = vmatpush2.bf16.msra.mxu0 0
        %665 = vmatprep.subr.bf16.mxu0 0
        %666 = vmatpush2.bf16.msra.mxu0 0
        %667 = vmatprep.subr.bf16.mxu0 0
        %668 = vmatpush2.bf16.msra.mxu0 0
        %669 = vmatprep.subr.bf16.mxu0 0
        %670 = vmatpush2.bf16.msra.mxu0 0
        %671 = vmatprep.subr.bf16.mxu0 0
        %672 = vmatpush2.bf16.msra.mxu0 0
        %673 = vmatprep.subr.bf16.mxu0 0
        %674 = vmatpush2.bf16.msra.mxu0 0
        %675 = vmatprep.subr.bf16.mxu0 0
        %676 = vmatpush2.bf16.msra.mxu0 0
        %677 = vmatprep.mubr.bf16.mxu0 0
        %678 = vmatmul.mubr.bf16.gmra.mxu0 %v622
        %v679 = vpop.f32.mrf.mxu0
        %v680 = vadd.f32 0.0, %v679
        %v681 = vpop.f32.mrf.mxu0
        %v682 = vadd.f32 0.0, %v681
        %v683 = vpop.f32.mrf.mxu0
        %v684 = vadd.f32 0.0, %v683
        %v685 = vpop.f32.mrf.mxu0
        %v686 = vadd.f32 0.0, %v685
        %687 = vmatprep.mubr.bf16.mxu0 0
        %688 = vmatmul.mubr.bf16.gmra.mxu0 %v625
        %v689 = vpop.f32.mrf.mxu0
        %v690 = vadd.f32 0.0, %v689
        %v691 = vpop.f32.mrf.mxu0
        %v692 = vadd.f32 0.0, %v691
        %v693 = vpop.f32.mrf.mxu0
        %v694 = vadd.f32 0.0, %v693
        %v695 = vpop.f32.mrf.mxu0
        %v696 = vadd.f32 0.0, %v695
        %697 = vmatprep.mubr.bf16.mxu0 0
        %698 = vmatmul.mubr.bf16.gmra.mxu0 %v628
        %v699 = vpop.f32.mrf.mxu0
        %v700 = vadd.f32 0.0, %v699
        %v701 = vpop.f32.mrf.mxu0
        %v702 = vadd.f32 0.0, %v701
        %v703 = vpop.f32.mrf.mxu0
        %v704 = vadd.f32 0.0, %v703
        %v705 = vpop.f32.mrf.mxu0
        %v706 = vadd.f32 0.0, %v705
        %707 = vmatprep.mubr.bf16.mxu0 0
        %708 = vmatmul.mubr.bf16.gmra.mxu0 %v631
        %v709 = vpop.f32.mrf.mxu0
        %v710 = vadd.f32 0.0, %v709
        %v711 = vpop.f32.mrf.mxu0
        %v712 = vadd.f32 0.0, %v711
        %v713 = vpop.f32.mrf.mxu0
        %v714 = vadd.f32 0.0, %v713
        %v715 = vpop.f32.mrf.mxu0
        %v716 = vadd.f32 0.0, %v715
        %717 = vmatprep.mubr.bf16.mxu0 0
        %718 = vmatmul.mubr.bf16.gmra.mxu0 %v634
        %v719 = vpop.f32.mrf.mxu0
        %v720 = vadd.f32 0.0, %v719
        %v721 = vpop.f32.mrf.mxu0
        %v722 = vadd.f32 0.0, %v721
        %v723 = vpop.f32.mrf.mxu0
        %v724 = vadd.f32 0.0, %v723
        %v725 = vpop.f32.mrf.mxu0
        %v726 = vadd.f32 0.0, %v725
        %727 = vmatprep.mubr.bf16.mxu0 0
        %728 = vmatmul.mubr.bf16.gmra.mxu0 %v637
        %v729 = vpop.f32.mrf.mxu0
        %v730 = vadd.f32 0.0, %v729
        %v731 = vpop.f32.mrf.mxu0
        %v732 = vadd.f32 0.0, %v731
        %v733 = vpop.f32.mrf.mxu0
        %v734 = vadd.f32 0.0, %v733
        %v735 = vpop.f32.mrf.mxu0
        %v736 = vadd.f32 0.0, %v735
        %737 = vmatprep.mubr.bf16.mxu0 0
        %738 = vmatmul.mubr.bf16.gmra.mxu0 %v640
        %v739 = vpop.f32.mrf.mxu0
        %v740 = vadd.f32 0.0, %v739
        %v741 = vpop.f32.mrf.mxu0
        %v742 = vadd.f32 0.0, %v741
        %v743 = vpop.f32.mrf.mxu0
        %v744 = vadd.f32 0.0, %v743
        %v745 = vpop.f32.mrf.mxu0
        %v746 = vadd.f32 0.0, %v745
        %747 = vmatprep.mubr.bf16.mxu0 0
        %748 = vmatmul.mubr.bf16.gmra.mxu0 %v643
        %v749 = vpop.f32.mrf.mxu0
        %v750 = vadd.f32 0.0, %v749
        %v751 = vpop.f32.mrf.mxu0
        %v752 = vadd.f32 0.0, %v751
        %v753 = vpop.f32.mrf.mxu0
        %v754 = vadd.f32 0.0, %v753
        %v755 = vpop.f32.mrf.mxu0
        %v756 = vadd.f32 0.0, %v755
        %757 = vdwg.mxu0
        %v758 = vpack.c.bf16 %v684, %v680
        %v759 = vpack.c.bf16 %v686, %v682
        %v760 = vpack.c.bf16 %v694, %v690
        %v761 = vpack.c.bf16 %v696, %v692
        %v762 = vpack.c.bf16 %v704, %v700
        %v763 = vpack.c.bf16 %v706, %v702
        %v764 = vpack.c.bf16 %v714, %v710
        %v765 = vpack.c.bf16 %v716, %v712
        %v766 = vpack.c.bf16 %v724, %v720
        %v767 = vpack.c.bf16 %v726, %v722
        %v768 = vpack.c.bf16 %v734, %v730
        %v769 = vpack.c.bf16 %v736, %v732
        %v770 = vpack.c.bf16 %v744, %v740
        %v771 = vpack.c.bf16 %v746, %v742
        %v772 = vpack.c.bf16 %v754, %v750
        %v773 = vpack.c.bf16 %v756, %v752
        %v790 = vunpack.c.l.b16 %v758
        %v791 = vunpack.c.l.b16 %v759
        %v792 = vunpack.c.h.b16 %v758
        %v793 = vunpack.c.h.b16 %v759
        %v794 = vunpack.c.l.b16 %v760
        %v795 = vunpack.c.l.b16 %v761
        %v796 = vunpack.c.h.b16 %v760
        %v797 = vunpack.c.h.b16 %v761
        %v798 = vunpack.c.l.b16 %v762
        %v799 = vunpack.c.l.b16 %v763
        %v800 = vunpack.c.h.b16 %v762
        %v801 = vunpack.c.h.b16 %v763
        %v802 = vunpack.c.l.b16 %v764
        %v803 = vunpack.c.l.b16 %v765
        %v804 = vunpack.c.h.b16 %v764
        %v805 = vunpack.c.h.b16 %v765
        %v806 = vunpack.c.l.b16 %v766
        %v807 = vunpack.c.l.b16 %v767
        %v808 = vunpack.c.h.b16 %v766
        %v809 = vunpack.c.h.b16 %v767
        %v810 = vunpack.c.l.b16 %v768
        %v811 = vunpack.c.l.b16 %v769
        %v812 = vunpack.c.h.b16 %v768
        %v813 = vunpack.c.h.b16 %v769
        %v814 = vunpack.c.l.b16 %v770
        %v815 = vunpack.c.l.b16 %v771
        %v816 = vunpack.c.h.b16 %v770
        %v817 = vunpack.c.h.b16 %v771
        %v818 = vunpack.c.l.b16 %v772
        %v819 = vunpack.c.l.b16 %v773
        %v820 = vunpack.c.h.b16 %v772
        %v821 = vunpack.c.h.b16 %v773
        %v822 = vpack.c.b16 %v791, %v790
        %v823 = vpack.c.b16 %v793, %v792
        %v824 = vpack.c.b16 %v795, %v794
        %v825 = vpack.c.b16 %v797, %v796
        %v826 = vpack.c.b16 %v799, %v798
        %v827 = vpack.c.b16 %v801, %v800
        %v828 = vpack.c.b16 %v803, %v802
        %v829 = vpack.c.b16 %v805, %v804
        %v830 = vpack.c.b16 %v807, %v806
        %v831 = vpack.c.b16 %v809, %v808
        %v832 = vpack.c.b16 %v811, %v810
        %v833 = vpack.c.b16 %v813, %v812
        %v834 = vpack.c.b16 %v815, %v814
        %v835 = vpack.c.b16 %v817, %v816
        %v836 = vpack.c.b16 %v819, %v818
        %v837 = vpack.c.b16 %v821, %v820
        %854 = vst [vmem:[%s228] sm:$0xff] %v822
        %855 = vst [vmem:[%s228 + $0x8] sm:$0xff] %v823
        %856 = vst [vmem:[%s228 + $0x10] sm:$0xff] %v824
        %857 = vst [vmem:[%s228 + $0x18] sm:$0xff] %v825
        %858 = vst [vmem:[%s228 + $0x20] sm:$0xff] %v826
        %859 = vst [vmem:[%s228 + $0x28] sm:$0xff] %v827
        %860 = vst [vmem:[%s228 + $0x30] sm:$0xff] %v828
        %861 = vst [vmem:[%s228 + $0x38] sm:$0xff] %v829
        %862 = vst [vmem:[%s228 + $0x40] sm:$0xff] %v830
        %863 = vst [vmem:[%s228 + $0x48] sm:$0xff] %v831
        %864 = vst [vmem:[%s228 + $0x50] sm:$0xff] %v832
        %865 = vst [vmem:[%s228 + $0x58] sm:$0xff] %v833
        %866 = vst [vmem:[%s228 + $0x60] sm:$0xff] %v834
        %867 = vst [vmem:[%s228 + $0x68] sm:$0xff] %v835
        %868 = vst [vmem:[%s228 + $0x70] sm:$0xff] %v836
        %869 = vst [vmem:[%s228 + $0x78] sm:$0xff] %v837
        %s870 = sand.u32 %s114, 1
        %s871 = scalar_lea.sflag [#allocation3], %s870
        %s872 = sand.u32 %s114, 1
        %s873 = smul.addr %s872, 128
        %s874 = scalar_lea.vmem [#allocation2], %s873
        %s875 = sand.u32 %s142, 1
        %s876 = scalar_lea.sflag [#allocation5], %s875
        %s877 = sand.u32 %s142, 1
        %s878 = smul.addr %s877, 128
        %s879 = scalar_lea.vmem [#allocation4], %s878
        // Predicated region
        $region33: #{tpu_custom_call.1} parent=31 // pred_check
          %p880 = pneg %p124
        $region34: #{tpu_custom_call.1} parent=31 // pred_check_branch
          %882 = sbr.rel (%p880) target = $region36
        $region35: #{tpu_custom_call.1} parent=31 // pred_region
          %s883 = smul.u32 2, %s27
          %s885 = ssub.s32 2048, 2048
          %886 = vsyncadd %s871, %s885
          %s887 = smul.addr %s26, 32
          %s888 = sadd.s32 %s883, %s887
          %s889 = smul.addr %s888, 64
          %s890 = scalar_lea.hbm %s3, %s889
          %s891 = sshll.u32 %s874, 4
          %s892 = int_to_ptr.vmem [resolvable:$true] %s891
          %897 = dma.vmem_to_hbm [thread:$0]  %s892, 2048, %s890, %s871, 128, 128, 8
        $region36: #{tpu_custom_call.1} parent=31 // pred_fallthru
          _
        // Predicated region
        $region37: #{tpu_custom_call.1} parent=31 // pred_check
          %p898 = pneg %p152
        $region38: #{tpu_custom_call.1} parent=31 // pred_check_branch
          %900 = sbr.rel (%p898) target = $region40
        $region39: #{tpu_custom_call.1} parent=31 // pred_region
          %s901 = smul.u32 2, %s27
          %s903 = ssub.s32 2048, 2048
          %904 = vsyncadd %s876, %s903
          %s905 = smul.addr %s26, 32
          %s906 = sadd.s32 %s901, %s905
          %s907 = smul.addr %s906, 64
          %s908 = scalar_lea.hbm %s4, %s907
          %s909 = sshll.u32 %s879, 4
          %s910 = int_to_ptr.vmem [resolvable:$true] %s909
          %915 = dma.vmem_to_hbm [thread:$0]  %s910, 2048, %s908, %s876, 128, 128, 8
        $region40: #{tpu_custom_call.1} parent=31 // pred_fallthru
          _
      $region32: #{tpu_custom_call.1} parent=5 // pred_fallthru
        _
      %p916 = scmp.le.s32.totalorder 2, %s17
      // Predicated region
      $region41: #{tpu_custom_call.1} parent=5 // pred_check
        %p917 = pneg %p916
      $region42: #{tpu_custom_call.1} parent=5 // pred_check_branch
        %919 = sbr.rel (%p917) target = $region44
      $region43: #{tpu_custom_call.1} parent=5 // pred_region
        %s920 = ssub.s32 %s17, 2
        // Predicated region
        $region45: #{tpu_custom_call.1} parent=43 // pred_check
          %p921 = pneg %p130
        $region46: #{tpu_custom_call.1} parent=43 // pred_check_branch
          %923 = sbr.rel (%p921) target = $region48
        $region47: #{tpu_custom_call.1} parent=43 // pred_region
          %s924 = sand.u32 %s115, 1
          %s925 = scalar_lea.sflag [#allocation3], %s924
          %s926 = sand.u32 %s115, 1
          %s927 = smul.addr %s926, 128
          %s928 = scalar_lea.vmem [#allocation2], %s927
          %929 = dma.done %s925, 2048
        $region48: #{tpu_custom_call.1} parent=43 // pred_fallthru
          _
        // Predicated region
        $region49: #{tpu_custom_call.1} parent=43 // pred_check
          %p930 = pneg %p158
        $region50: #{tpu_custom_call.1} parent=43 // pred_check_branch
          %932 = sbr.rel (%p930) target = $region52
        $region51: #{tpu_custom_call.1} parent=43 // pred_region
          %s933 = sand.u32 %s143, 1
          %s934 = scalar_lea.sflag [#allocation5], %s933
          %s935 = sand.u32 %s143, 1
          %s936 = smul.addr %s935, 128
          %s937 = scalar_lea.vmem [#allocation4], %s936
          %938 = dma.done %s934, 2048
        $region52: #{tpu_custom_call.1} parent=43 // pred_fallthru
          _
      $region44: #{tpu_custom_call.1} parent=5 // pred_fallthru
        _
    $region6: #{tpu_custom_call.1} parent=1 // loop_footer
      %s21 = sadd.s32 1, %s17
    $region7: #{tpu_custom_call.1} parent=1 // loop_footer_branch
      %16 = sbr.rel target = $region3
    $region8: #{tpu_custom_call.1} parent=1 // loop_exit
      _
    %939 = vsyncpa [#allocation3], 1
    %s940 = scalar_lea.sflag [#allocation3], 1
    %941 = vsyncpa %s940, 1
    %942 = vsyncpa [#allocation5], 1
    %s943 = scalar_lea.sflag [#allocation5], 1
    %944 = vsyncpa %s943, 1

</llo_original>
